<compile_context>
chip_gen: v5e
topology: v5e:2x2
jax: 0.10.0
libtpu: 0.0.40
codegen_flags: <defaults>
</compile_context>

<pallas_src>
import functools
import math

import jax
import jax.numpy as jnp
from jax.experimental import pallas as pl
from jax.experimental.pallas import tpu as pltpu


def _round_up(x, m):
    return ((x + m - 1) // m) * m


def _itemsize(dt):
    return jnp.dtype(dt).itemsize


def _block_spec(shape, index_map, *, buffers=None):
    """BlockSpec with optional explicit buffer depth (graceful fallback if the
    running jax does not support pipeline_mode/Buffered)."""
    if buffers is None:
        return pl.BlockSpec(shape, index_map)
    try:
        return pl.BlockSpec(shape, index_map, pipeline_mode=pl.Buffered(buffers))
    except (TypeError, AttributeError):
        return pl.BlockSpec(shape, index_map)


def _vmem_limit_bytes():
    # ~75% of physical VMEM: 96 MiB on v5e/v6e (128 MiB phys), 48 MiB on v7x
    # (64 MiB phys) -- leaves headroom for compiler scratch / semaphores.
    try:
        cap = pltpu.get_tpu_info().vmem_capacity_bytes
    except Exception:
        cap = 64 * 1024 * 1024
    return int(cap) * 3 // 4


def embed_fc_kernel(x_ref, w1_ref, b1_ref, w2_ref, b2_ref, o_ref, h_ref, *,
                    approximate_gelu):
    # Grid = (row tiles i, hidden-dim column tiles j).
    # h = GELU(x @ W1 + b1) is computed once per row tile (at j == 0) into a
    # VMEM scratch and reused for every W2 column tile.
    @pl.when(pl.program_id(1) == 0)
    def _():
        x = x_ref[...].astype(w1_ref.dtype)   # full-rate MXU when weights are bf16
        h = jnp.dot(x, w1_ref[...], preferred_element_type=jnp.float32)
        h = h + b1_ref[...].astype(jnp.float32)
        if approximate_gelu:
            h = jax.nn.gelu(h, approximate=True)        # EUP tanh path
        else:
            # exact GELU (PyTorch nn.GELU default): 0.5*x*(1+erf(x/sqrt(2)))
            h = 0.5 * h * (1.0 + jax.lax.erf(h * (1.0 / math.sqrt(2.0))))
        h_ref[...] = h.astype(h_ref.dtype)

    out = jnp.dot(h_ref[...], w2_ref[...], preferred_element_type=jnp.float32)
    out = out + b2_ref[...].astype(jnp.float32)
    o_ref[...] = out.astype(o_ref.dtype)


def prepare_embed_fc_params(w1, b1, w2, b2):
    """One-time, hoisted lane-dense padding of the parameters.

    Weights are (in, out) -- transposed vs. PyTorch nn.Linear.weight; biases 1-D.
    Padding is exact: padded hidden columns get 0 weight + 0 bias, GELU(0)=0,
    padded W2 rows multiply those zeros, padded output columns are sliced off.
    """
    input_dim, hidden_dim = w1.shape
    K = _round_up(input_dim, 128)
    N = _round_up(hidden_dim, 128)

    def pad2(a, r, c):
        if a.shape == (r, c):
            return a
        return jnp.zeros((r, c), a.dtype).at[:a.shape[0], :a.shape[1]].set(a)

    return {
        "w1": pad2(w1, K, N),
        "b1": pad2(b1.reshape(1, -1), 1, N),
        "w2": pad2(w2, N, N),
        "b2": pad2(b2.reshape(1, -1), 1, N),
        "input_dim": input_dim,
        "hidden_dim": hidden_dim,
    }


def embed_fc(x, params, *, tile_m=256, approximate_gelu=False):
    """EmbedFC forward: reshape(-1, input_dim) -> Linear -> GELU -> Linear."""
    w1, b1, w2, b2 = params["w1"], params["b1"], params["w2"], params["b2"]
    input_dim, hidden_dim = params["input_dim"], params["hidden_dim"]
    K, N = w1.shape

    x2 = x.reshape(-1, input_dim)               # PyTorch: x.reshape(-1, input_dim)
    M = x2.shape[0]
    if input_dim != K:                          # pad x only when K needs lane padding
        x2 = jnp.zeros((M, K), x2.dtype).at[:, :input_dim].set(x2)

    vmem_limit = _vmem_limit_bytes()
    x_b = _itemsize(x2.dtype)
    w_b = _itemsize(w1.dtype)
    o_b = _itemsize(x.dtype)

    # W2 column tile: keep the full N resident while cheap, otherwise tile the
    # hidden dim (the cached h scratch makes extra column steps nearly free).
    max_w2_tile = 8 * 1024 * 1024
    if N * N * w_b <= 2 * max_w2_tile:
        tn = N
    else:
        tn = max(128, min(N, (max_w2_tile // (N * w_b)) // 128 * 128))
    grid_n = pl.cdiv(N, tn)
    w2_bufs = 1 if grid_n == 1 else 2           # constants don't need double buffers

    # Row tile.
    m8 = _round_up(M, 8)
    tm = min(_round_up(tile_m, 8), m8)
    # v7x has two TensorCores: give the parallel row axis >= 2 steps for
    # mid/large batches (negligible extra cost on single-TC v5e/v6e).
    if M >= 256 and pl.cdiv(M, tm) < 2:
        tm = max(8, _round_up(pl.cdiv(M, 2), 8))

    def vmem_est(tm_):
        return (2 * tm_ * K * x_b                               # x (double-buffered)
                + K * N * w_b + N * _itemsize(b1.dtype)         # W1, b1 (single)
                + w2_bufs * (N * tn * w_b + tn * _itemsize(b2.dtype))
                + 2 * tm_ * tn * o_b                            # out (double-buffered)
                + tm_ * N * w_b)                                # h scratch

    while tm > 8 and vmem_est(tm) > 0.85 * vmem_limit:
        tm = max(8, _round_up(tm // 2, 8))

    grid_m = pl.cdiv(M, tm)

    kernel = functools.partial(embed_fc_kernel, approximate_gelu=approximate_gelu)

    out = pl.pallas_call(
        kernel,
        out_shape=jax.ShapeDtypeStruct((M, N), x.dtype),
        grid_spec=pltpu.PrefetchScalarGridSpec(
            num_scalar_prefetch=0,
            grid=(grid_m, grid_n),
            in_specs=[
                _block_spec((tm, K), lambda i, j: (i, 0)),                   # x tile (streamed)
                _block_spec((K, N), lambda i, j: (0, 0), buffers=1),         # W1 (resident, 1 buf)
                _block_spec((1, N), lambda i, j: (0, 0), buffers=1),         # b1 (resident, 1 buf)
                _block_spec((N, tn), lambda i, j: (0, j), buffers=w2_bufs),  # W2 column tile
                _block_spec((1, tn), lambda i, j: (0, j), buffers=w2_bufs),  # b2 column tile
            ],
            out_specs=pl.BlockSpec((tm, tn), lambda i, j: (i, j)),
            scratch_shapes=[pltpu.VMEM((tm, N), w2.dtype)],                  # cached GELU(xW1+b1)
        ),
        compiler_params=pltpu.CompilerParams(
            dimension_semantics=("parallel", "arbitrary"),
            vmem_limit_bytes=vmem_limit,
        ),
    )(x2, w1, b1, w2, b2)

    # Strip lane padding on the hidden dim only when it exists.
    return out if hidden_dim == N else out[:, :hidden_dim]


def init_embed_fc_params(key, input_dim, hidden_dim, dtype=jnp.float32):
    """Deterministic init mirroring nn.Linear's U(-1/sqrt(fan_in), 1/sqrt(fan_in)).
    Weights are returned already transposed to (in, out) for the kernel."""
    k1, k2, k3, k4 = jax.random.split(key, 4)
    bound1 = 1.0 / math.sqrt(input_dim)
    bound2 = 1.0 / math.sqrt(hidden_dim)
    w1 = jax.random.uniform(k1, (input_dim, hidden_dim), dtype, -bound1, bound1)
    b1 = jax.random.uniform(k2, (hidden_dim,), dtype, -bound1, bound1)
    w2 = jax.random.uniform(k3, (hidden_dim, hidden_dim), dtype, -bound2, bound2)
    b2 = jax.random.uniform(k4, (hidden_dim,), dtype, -bound2, bound2)
    return w1, b1, w2, b2


if __name__ == "__main__":
    input_dim = 16
    hidden_dim = 32

    key = jax.random.PRNGKey(0)
    kx, kp = jax.random.split(key)

    # x: (batch=2, channels=4, feat=16) -> reshape(-1, 16) -> (8, 16)
    x = jax.random.normal(kx, (2, 4, input_dim), dtype=jnp.float32)
    w1, b1, w2, b2 = init_embed_fc_params(kp, input_dim, hidden_dim)

    params = prepare_embed_fc_params(w1, b1, w2, b2)   # padding hoisted out of the call path
    out = embed_fc(x, params)
    jax.block_until_ready(out)

    # quick correctness check against plain-JAX reference (exact GELU)
    xr = x.reshape(-1, input_dim)
    h = xr @ w1 + b1
    h = 0.5 * h * (1.0 + jax.lax.erf(h / jnp.sqrt(2.0)))
    ref = h @ w2 + b2
    assert out.shape == (8, hidden_dim)
    assert jnp.allclose(out, ref, atol=1e-5, rtol=1e-5)

    print("KERNEL_OK")
</pallas_src>

<mosaic_0001>
module attributes {stable_mosaic.version = 11 : i64} {
  func.func @embed_fc_kernel(%arg0: i32, %arg1: i32, %arg2: memref<8x128xf32, #tpu.memory_space<vmem>>, %arg3: memref<128x128xf32, #tpu.memory_space<vmem>>, %arg4: memref<1x128xf32, #tpu.memory_space<vmem>>, %arg5: memref<128x128xf32, #tpu.memory_space<vmem>>, %arg6: memref<1x128xf32, #tpu.memory_space<vmem>>, %arg7: memref<8x128xf32, #tpu.memory_space<vmem>>, %arg8: memref<8x128xf32, #tpu.memory_space<vmem>>) attributes {dimension_semantics = [#tpu.dimension_semantics<parallel>, #tpu.dimension_semantics<arbitrary>], iteration_bounds = array<i64: 1, 1>, scalar_prefetch = 0 : i64, scratch_operands = 1 : i64, tpu.core_type = #tpu.core_type<tc>, window_params = [{transform_indices = @transform_0, window_bounds = array<i64: 8, 128>}, {pipeline_mode = #tpu.pipeline_mode<synchronous>, transform_indices = @transform_1, window_bounds = array<i64: 128, 128>}, {pipeline_mode = #tpu.pipeline_mode<synchronous>, transform_indices = @transform_2, window_bounds = array<i64: 1, 128>}, {pipeline_mode = #tpu.pipeline_mode<synchronous>, transform_indices = @transform_3, window_bounds = array<i64: 128, 128>}, {pipeline_mode = #tpu.pipeline_mode<synchronous>, transform_indices = @transform_4, window_bounds = array<i64: 1, 128>}, {transform_indices = @transform_5, window_bounds = array<i64: 8, 128>}]} {
    %c0_i32 = arith.constant 0 : i32
    %0 = arith.cmpi eq, %arg1, %c0_i32 : i32
    %1 = arith.extui %0 : i1 to i32
    %c0_i32_0 = arith.constant 0 : i32
    %2 = arith.cmpi ne, %1, %c0_i32_0 : i32
    scf.if %2 {
      %c0_8 = arith.constant 0 : index
      %c0_9 = arith.constant 0 : index
      %10 = vector.load %arg2[%c0_8, %c0_9] : memref<8x128xf32, #tpu.memory_space<vmem>>, vector<8x128xf32>
      %c0_10 = arith.constant 0 : index
      %c0_11 = arith.constant 0 : index
      %11 = vector.load %arg3[%c0_10, %c0_11] : memref<128x128xf32, #tpu.memory_space<vmem>>, vector<128x128xf32>
      %cst_12 = arith.constant dense<0.000000e+00> : vector<8x128xf32>
      %12 = tpu.matmul %10, %11, %cst_12 {dimension_numbers = #tpu.dot_dimension_numbers<[1], [0], [0], [1], [0, 0, 1, 1], [], []>} : vector<8x128xf32>, vector<128x128xf32>, vector<8x128xf32> -> vector<8x128xf32>
      %c0_13 = arith.constant 0 : index
      %c0_14 = arith.constant 0 : index
      %13 = vector.load %arg4[%c0_13, %c0_14] : memref<1x128xf32, #tpu.memory_space<vmem>>, vector<1x128xf32>
      %14 = vector.broadcast %13 : vector<1x128xf32> to vector<8x128xf32>
      %15 = arith.addf %12, %14 : vector<8x128xf32>
      %cst_15 = arith.constant 5.000000e-01 : f32
      %16 = vector.broadcast %cst_15 : f32 to vector<8x128xf32>
      %17 = arith.mulf %16, %15 : vector<8x128xf32>
      %cst_16 = arith.constant 0.707106769 : f32
      %18 = vector.broadcast %cst_16 : f32 to vector<8x128xf32>
      %19 = arith.mulf %15, %18 : vector<8x128xf32>
      %20 = math.erf %19 : vector<8x128xf32>
      %cst_17 = arith.constant 1.000000e+00 : f32
      %21 = vector.broadcast %cst_17 : f32 to vector<8x128xf32>
      %22 = arith.addf %21, %20 : vector<8x128xf32>
      %23 = arith.mulf %17, %22 : vector<8x128xf32>
      %c0_18 = arith.constant 0 : index
      %c0_19 = arith.constant 0 : index
      %24 = vector.load %arg8[%c0_18, %c0_19] : memref<8x128xf32, #tpu.memory_space<vmem>>, vector<8x128xf32>
      tpu.vector_store %arg8[%c0_18, %c0_19], %23 {strides = array<i32>} : memref<8x128xf32, #tpu.memory_space<vmem>>, vector<8x128xf32>,
    } else {
    }
    %c0 = arith.constant 0 : index
    %c0_1 = arith.constant 0 : index
    %3 = vector.load %arg8[%c0, %c0_1] : memref<8x128xf32, #tpu.memory_space<vmem>>, vector<8x128xf32>
    %c0_2 = arith.constant 0 : index
    %c0_3 = arith.constant 0 : index
    %4 = vector.load %arg5[%c0_2, %c0_3] : memref<128x128xf32, #tpu.memory_space<vmem>>, vector<128x128xf32>
    %cst = arith.constant dense<0.000000e+00> : vector<8x128xf32>
    %5 = tpu.matmul %3, %4, %cst {dimension_numbers = #tpu.dot_dimension_numbers<[1], [0], [0], [1], [0, 0, 1, 1], [], []>} : vector<8x128xf32>, vector<128x128xf32>, vector<8x128xf32> -> vector<8x128xf32>
    %c0_4 = arith.constant 0 : index
    %c0_5 = arith.constant 0 : index
    %6 = vector.load %arg6[%c0_4, %c0_5] : memref<1x128xf32, #tpu.memory_space<vmem>>, vector<1x128xf32>
    %7 = vector.broadcast %6 : vector<1x128xf32> to vector<8x128xf32>
    %8 = arith.addf %5, %7 : vector<8x128xf32>
    %c0_6 = arith.constant 0 : index
    %c0_7 = arith.constant 0 : index
    %9 = vector.load %arg7[%c0_6, %c0_7] : memref<8x128xf32, #tpu.memory_space<vmem>>, vector<8x128xf32>
    tpu.vector_store %arg7[%c0_6, %c0_7], %8 {strides = array<i32>} : memref<8x128xf32, #tpu.memory_space<vmem>>, vector<8x128xf32>,
    return
  }
  func.func @transform_0(%arg0: i32, %arg1: i32) -> (i32, i32) {
    %c0_i32 = arith.constant 0 : i32
    %c0_i32_0 = arith.constant 0 : i32
    return %arg0, %c0_i32 : i32, i32
  }
  func.func @transform_1(%arg0: i32, %arg1: i32) -> (i32, i32) {
    %c0_i32 = arith.constant 0 : i32
    %c0_i32_0 = arith.constant 0 : i32
    %c0_i32_1 = arith.constant 0 : i32
    return %c0_i32, %c0_i32_0 : i32, i32
  }
  func.func @transform_2(%arg0: i32, %arg1: i32) -> (i32, i32) {
    %c0_i32 = arith.constant 0 : i32
    %c0_i32_0 = arith.constant 0 : i32
    %c0_i32_1 = arith.constant 0 : i32
    return %c0_i32, %c0_i32_0 : i32, i32
  }
  func.func @transform_3(%arg0: i32, %arg1: i32) -> (i32, i32) {
    %c0_i32 = arith.constant 0 : i32
    %c0_i32_0 = arith.constant 0 : i32
    return %c0_i32, %arg1 : i32, i32
  }
  func.func @transform_4(%arg0: i32, %arg1: i32) -> (i32, i32) {
    %c0_i32 = arith.constant 0 : i32
    %c0_i32_0 = arith.constant 0 : i32
    return %c0_i32, %arg1 : i32, i32
  }
  func.func @transform_5(%arg0: i32, %arg1: i32) -> (i32, i32) {
    %c0_i32 = arith.constant 0 : i32
    return %arg0, %arg1 : i32, i32
  }
}

</mosaic_0001>

<llo_original>
// kernel: tpu_custom_call.1
$region0: #{tpu_custom_call.1}
  #allocation0 [shape = 'u32[]', space=smem, size = 0x4, offset = 0x4, fixed_abs, tag = 'smem constant byte address 0x4 - core index']
  #allocation1 [shape = 'u32[72,128]{1,0:T(1,128)}', space=vmem, size = 0x9000, scoped, tag = 'internal scratch']
  #allocation2 [shape = 'f32[8,128]{1,0:T(8,128)}', space=vmem, size = 0x1000, scoped, tag = 'scratch operand']
  %s0 = inlined_call_operand.hbm [shape: f32[8,128], index: 0, kind: input, shape index: {}]
  %s1 = inlined_call_operand.hbm [shape: f32[128,128], index: 1, kind: input, shape index: {}]
  %s2 = inlined_call_operand.vmem [shape: f32[1,128], index: 2, kind: input, shape index: {}]
  %s3 = inlined_call_operand.hbm [shape: f32[128,128], index: 3, kind: input, shape index: {}]
  %s4 = inlined_call_operand.vmem [shape: f32[1,128], index: 4, kind: input, shape index: {}]
  %s5 = inlined_call_operand.hbm [shape: f32[8,128], index: 5, kind: output, shape index: {}]
  %s6 = sld [smem:[#allocation0]]
  $region46: #{tpu_custom_call.1} parent=0
    _
  %s8 = ssub.s32 1, %s6
  %s9 = scalar_select 0, %s8, %s6
  $region1: #{tpu_custom_call.1} parent=0
    #allocation3 [shape = 'u8[4096]{0}', space=vmem, size = 0x1000, scoped, tag = 'input window, operand 0, single buffered']
    #allocation4 [shape = 's32[1]{0}', space=sflag, size = 0x4, scoped, tag = 'scoped memory for tpu_custom_call.1']
    #allocation5 [shape = 's32[1]{0}', space=sflag, size = 0x4, scoped, tag = 'scoped memory for tpu_custom_call.1']
    #allocation6 [shape = 'u8[65536]{0}', space=vmem, size = 0x10000, scoped, tag = 'input window, operand 1, single buffered']
    #allocation7 [shape = 's32[1]{0}', space=sflag, size = 0x4, scoped, tag = 'scoped memory for tpu_custom_call.1']
    #allocation8 [shape = 'u8[65536]{0}', space=vmem, size = 0x10000, scoped, tag = 'input window, operand 3, single buffered']
    #allocation9 [shape = 'u8[4096]{0}', space=vmem, size = 0x1000, scoped, tag = 'output window, operand 0, single buffered']
    %10 = vsyncpa [#allocation4], 0
    %11 = vsyncpa [#allocation7], 0
    %12 = vsyncpa [#allocation5], 0
    // Predicated region
    $region2: #{tpu_custom_call.1} parent=1 // pred_check
      _
    $region3: #{tpu_custom_call.1} parent=1 // pred_check_branch
      %14 = sbr.rel (0) target = $region5
    $region4: #{tpu_custom_call.1} parent=1 // pred_region
      %16 = vsyncadd [#allocation4], 0
      %s18 = sshll.u32 %s0, 4
      %s19 = int_to_ptr.hbm [resolvable:$true] %s18
      %s20 = sshll.u32 [#allocation3], 4
      %s21 = int_to_ptr.vmem [resolvable:$true] %s20
      %23 = dma.hbm_to_vmem [thread:$0]  %s19, 128, %s21, [#allocation4]
    $region5: #{tpu_custom_call.1} parent=1 // pred_fallthru
      _
    // Predicated region
    $region6: #{tpu_custom_call.1} parent=1 // pred_check
      _
    $region7: #{tpu_custom_call.1} parent=1 // pred_check_branch
      %25 = sbr.rel (0) target = $region9
    $region8: #{tpu_custom_call.1} parent=1 // pred_region
      %27 = vsyncadd [#allocation7], 0
      %s28 = sshll.u32 %s1, 4
      %s29 = int_to_ptr.hbm [resolvable:$true] %s28
      %s30 = sshll.u32 [#allocation6], 4
      %s31 = int_to_ptr.vmem [resolvable:$true] %s30
      %36 = dma.hbm_to_vmem [thread:$0]  %s29, 2048, %s31, [#allocation7], 128, 128, 8
    $region9: #{tpu_custom_call.1} parent=1 // pred_fallthru
      _
    // Predicated region
    $region10: #{tpu_custom_call.1} parent=1 // pred_check
      _
    $region11: #{tpu_custom_call.1} parent=1 // pred_check_branch
      %38 = sbr.rel (0) target = $region13
    $region12: #{tpu_custom_call.1} parent=1 // pred_region
      _
    $region13: #{tpu_custom_call.1} parent=1 // pred_fallthru
      _
    // Predicated region
    $region14: #{tpu_custom_call.1} parent=1 // pred_check
      _
    $region15: #{tpu_custom_call.1} parent=1 // pred_check_branch
      %40 = sbr.rel (0) target = $region17
    $region16: #{tpu_custom_call.1} parent=1 // pred_region
      %42 = vsyncadd [#allocation7], 0
      %s43 = sshll.u32 %s3, 4
      %s44 = int_to_ptr.hbm [resolvable:$true] %s43
      %s45 = sshll.u32 [#allocation8], 4
      %s46 = int_to_ptr.vmem [resolvable:$true] %s45
      %51 = dma.hbm_to_vmem [thread:$0]  %s44, 2048, %s46, [#allocation7], 128, 128, 8
    $region17: #{tpu_custom_call.1} parent=1 // pred_fallthru
      _
    // Predicated region
    $region18: #{tpu_custom_call.1} parent=1 // pred_check
      _
    $region19: #{tpu_custom_call.1} parent=1 // pred_check_branch
      %53 = sbr.rel (0) target = $region21
    $region20: #{tpu_custom_call.1} parent=1 // pred_region
      _
    $region21: #{tpu_custom_call.1} parent=1 // pred_fallthru
      _
    // Predicated region
    $region22: #{tpu_custom_call.1} parent=1 // pred_check
      _
    $region23: #{tpu_custom_call.1} parent=1 // pred_check_branch
      %55 = sbr.rel (0) target = $region25
    $region24: #{tpu_custom_call.1} parent=1 // pred_region
      %57 = dma.done [#allocation4], 128
    $region25: #{tpu_custom_call.1} parent=1 // pred_fallthru
      _
    // Predicated region
    $region26: #{tpu_custom_call.1} parent=1 // pred_check
      _
    $region27: #{tpu_custom_call.1} parent=1 // pred_check_branch
      %59 = sbr.rel (0) target = $region29
    $region28: #{tpu_custom_call.1} parent=1 // pred_region
      %61 = dma.done [#allocation7], 2048
    $region29: #{tpu_custom_call.1} parent=1 // pred_fallthru
      _
    // Predicated region
    $region30: #{tpu_custom_call.1} parent=1 // pred_check
      _
    $region31: #{tpu_custom_call.1} parent=1 // pred_check_branch
      %63 = sbr.rel (0) target = $region33
    $region32: #{tpu_custom_call.1} parent=1 // pred_region
      %65 = dma.done [#allocation7], 2048
    $region33: #{tpu_custom_call.1} parent=1 // pred_fallthru
      _
    %p66 = scmp.eq.s32.totalorder 0, 0
    // Predicated region
    $region34: #{tpu_custom_call.1} parent=1 // pred_check
      %p67 = pneg %p66
    $region35: #{tpu_custom_call.1} parent=1 // pred_check_branch
      %69 = sbr.rel (%p67) target = $region37
    $region36: #{tpu_custom_call.1} parent=1 // pred_region
      %v70 = vld [vmem:[#allocation3] sm:$0xff]
      %v71 = vld [vmem:[#allocation6] sm:$0xff]
      %v72 = vld [vmem:[#allocation6 + $0x8] sm:$0xff]
      %v73 = vld [vmem:[#allocation6 + $0x10] sm:$0xff]
      %v74 = vld [vmem:[#allocation6 + $0x18] sm:$0xff]
      %v75 = vld [vmem:[#allocation6 + $0x20] sm:$0xff]
      %v76 = vld [vmem:[#allocation6 + $0x28] sm:$0xff]
      %v77 = vld [vmem:[#allocation6 + $0x30] sm:$0xff]
      %v78 = vld [vmem:[#allocation6 + $0x38] sm:$0xff]
      %v79 = vld [vmem:[#allocation6 + $0x40] sm:$0xff]
      %v80 = vld [vmem:[#allocation6 + $0x48] sm:$0xff]
      %v81 = vld [vmem:[#allocation6 + $0x50] sm:$0xff]
      %v82 = vld [vmem:[#allocation6 + $0x58] sm:$0xff]
      %v83 = vld [vmem:[#allocation6 + $0x60] sm:$0xff]
      %v84 = vld [vmem:[#allocation6 + $0x68] sm:$0xff]
      %v85 = vld [vmem:[#allocation6 + $0x70] sm:$0xff]
      %v86 = vld [vmem:[#allocation6 + $0x78] sm:$0xff]
      %v87 = vld [vmem:[%s2] sm:$0x1]
      %v89 = vperm.slane %v87, 0
      %91 = vmatpush.msra.mxu0 %v86
      %92 = vmatpush.msra.mxu0 %v85
      %93 = vmatpush.msra.mxu0 %v84
      %94 = vmatpush.msra.mxu0 %v83
      %95 = vmatpush.msra.mxu0 %v82
      %96 = vmatpush.msra.mxu0 %v81
      %97 = vmatpush.msra.mxu0 %v80
      %98 = vmatpush.msra.mxu0 %v79
      %99 = vmatpush.msra.mxu0 %v78
      %100 = vmatpush.msra.mxu0 %v77
      %101 = vmatpush.msra.mxu0 %v76
      %102 = vmatpush.msra.mxu0 %v75
      %103 = vmatpush.msra.mxu0 %v74
      %104 = vmatpush.msra.mxu0 %v73
      %105 = vmatpush.msra.mxu0 %v72
      %106 = vmatpush.msra.mxu0 %v71
      %107 = vmatmul.f32.gmra.mxu0 %v70
      %v108 = vpop.f32.mrf.mxu0
      %v109 = vadd.f32 %v89, %v108
      %110 = vdwg.mxu0
      %v111 = vmul.f32 %v109, 0.5
      %v112 = vmul.f32 %v109, 0.70710677
      %v113 = vmul.f32 %v112, %v112
      %v114 = vmin.f32 16.0, %v113
      %v115 = vmul.f32 %v114, 2.1237322e-06
      %v116 = vadd.f32 %v115, 0.00028619796
      %v117 = vmul.f32 %v114, %v116
      %v118 = vadd.f32 %v117, 0.0036580483
      %v119 = vmul.f32 %v114, %v118
      %v120 = vadd.f32 %v119, 0.05243302
      %v121 = vmul.f32 %v114, %v120
      %v122 = vadd.f32 %v121, 0.18741608
      %v123 = vmul.f32 %v114, %v122
      %v124 = vadd.f32 %v123, 1.1283791
      %v125 = vmul.f32 %v112, %v124
      %v126 = vmul.f32 %v114, 3.8918573e-05
      %v127 = vadd.f32 %v126, 0.001143296
      %v128 = vmul.f32 %v114, %v127
      %v129 = vadd.f32 %v128, 0.014752088
      %v130 = vmul.f32 %v114, %v129
      %v131 = vadd.f32 %v130, 0.112945676
      %v132 = vmul.f32 %v114, %v131
      %v133 = vadd.f32 %v132, 0.4994258
      %v134 = vmul.f32 %v114, %v133
      %v135 = vadd.f32 %v134, 1.0
      %v136 = vrcp.pop %v135
      %v137 = vmul.f32 %v135, %v136
      %v138 = vsub.f32 1.0, %v137
      %v139 = vmul.f32 %v136, %v138
      %v140 = vadd.f32 %v136, %v139
      %vm141 = vweird.f32 %v135
      %vm142 = vweird.f32 %v136
      %vm143 = vmor %vm141, %vm142
      %v144 = vsel %vm143, %v136, %v140
      %v145 = vand.u32 2147483647, %v135
      %vm146 = vcmp.eq.f32.partialorder %v145, 8.507059e+37
      %v147 = vand.u32 %v135, 2147483648
      %v148 = vor.u32 1.1754944e-38, %v147
      %v149 = vsel %vm146, %v148, %v144
      %v150 = vmul.f32 %v125, %v149
      %v151 = vmin.f32 %v150, 1.0
      %v152 = vmax.f32 %v151, -1.0
      %v153 = vadd.f32 %v152, 1.0
      %v154 = vmul.f32 %v111, %v153
      %155 = vst [vmem:[#allocation2] sm:$0xff] %v154
    $region37: #{tpu_custom_call.1} parent=1 // pred_fallthru
      _
    %v156 = vld [vmem:[#allocation2] sm:$0xff]
    %v157 = vld [vmem:[#allocation8] sm:$0xff]
    %v158 = vld [vmem:[#allocation8 + $0x8] sm:$0xff]
    %v159 = vld [vmem:[#allocation8 + $0x10] sm:$0xff]
    %v160 = vld [vmem:[#allocation8 + $0x18] sm:$0xff]
    %v161 = vld [vmem:[#allocation8 + $0x20] sm:$0xff]
    %v162 = vld [vmem:[#allocation8 + $0x28] sm:$0xff]
    %v163 = vld [vmem:[#allocation8 + $0x30] sm:$0xff]
    %v164 = vld [vmem:[#allocation8 + $0x38] sm:$0xff]
    %v165 = vld [vmem:[#allocation8 + $0x40] sm:$0xff]
    %v166 = vld [vmem:[#allocation8 + $0x48] sm:$0xff]
    %v167 = vld [vmem:[#allocation8 + $0x50] sm:$0xff]
    %v168 = vld [vmem:[#allocation8 + $0x58] sm:$0xff]
    %v169 = vld [vmem:[#allocation8 + $0x60] sm:$0xff]
    %v170 = vld [vmem:[#allocation8 + $0x68] sm:$0xff]
    %v171 = vld [vmem:[#allocation8 + $0x70] sm:$0xff]
    %v172 = vld [vmem:[#allocation8 + $0x78] sm:$0xff]
    %v173 = vld [vmem:[%s4] sm:$0x1]
    %v175 = vperm.slane %v173, 0
    %177 = vmatpush.msra.mxu0 %v172
    %178 = vmatpush.msra.mxu0 %v171
    %179 = vmatpush.msra.mxu0 %v170
    %180 = vmatpush.msra.mxu0 %v169
    %181 = vmatpush.msra.mxu0 %v168
    %182 = vmatpush.msra.mxu0 %v167
    %183 = vmatpush.msra.mxu0 %v166
    %184 = vmatpush.msra.mxu0 %v165
    %185 = vmatpush.msra.mxu0 %v164
    %186 = vmatpush.msra.mxu0 %v163
    %187 = vmatpush.msra.mxu0 %v162
    %188 = vmatpush.msra.mxu0 %v161
    %189 = vmatpush.msra.mxu0 %v160
    %190 = vmatpush.msra.mxu0 %v159
    %191 = vmatpush.msra.mxu0 %v158
    %192 = vmatpush.msra.mxu0 %v157
    %193 = vmatmul.f32.gmra.mxu0 %v156
    %v194 = vpop.f32.mrf.mxu0
    %v195 = vadd.f32 %v175, %v194
    %196 = vdwg.mxu0
    %197 = vst [vmem:[#allocation9] sm:$0xff] %v195
    // Predicated region
    $region38: #{tpu_custom_call.1} parent=1 // pred_check
      _
    $region39: #{tpu_custom_call.1} parent=1 // pred_check_branch
      %199 = sbr.rel (0) target = $region41
    $region40: #{tpu_custom_call.1} parent=1 // pred_region
      %201 = vsyncadd [#allocation5], 0
      %s203 = sshll.u32 [#allocation9], 4
      %s204 = int_to_ptr.vmem [resolvable:$true] %s203
      %s205 = sshll.u32 %s5, 4
      %s206 = int_to_ptr.hbm [resolvable:$true] %s205
      %208 = dma.vmem_to_hbm [thread:$0]  %s204, 128, %s206, [#allocation5]
    $region41: #{tpu_custom_call.1} parent=1 // pred_fallthru
      _
    // Predicated region
    $region42: #{tpu_custom_call.1} parent=1 // pred_check
      _
    $region43: #{tpu_custom_call.1} parent=1 // pred_check_branch
      %210 = sbr.rel (0) target = $region45
    $region44: #{tpu_custom_call.1} parent=1 // pred_region
      %212 = dma.done [#allocation5], 128
    $region45: #{tpu_custom_call.1} parent=1 // pred_fallthru
      _
    %213 = vsyncpa [#allocation4], 1
    %214 = vsyncpa [#allocation7], 1
    %215 = vsyncpa [#allocation5], 1

</llo_original>
